<compile_context>
chip_gen: v7x
topology: tpu7x:2x2x1
jax: 0.10.0
libtpu: 0.0.40
codegen_flags: <defaults>
</compile_context>

<pallas_src>
import jax
import jax.numpy as jnp
from jax.experimental import pallas as pl
from jax.experimental.pallas import tpu as pltpu

# ------------------------- model dimensions -------------------------------
B = 2                 # batch
IMG_C, IMG_H, IMG_W = 4, 16, 16
EMG_C, EMG_T = 4, 8
IMG_FEATS = IMG_C * IMG_H * IMG_W          # 1024
EMG_FEATS = EMG_C * EMG_T                  # 32
LATENT_IMG = 128                           # image_encoder.latent_size
LATENT_EMG = 128                           # emg_encoder.latent_size


# ------------------------------ kernel -------------------------------------
def mcefnn_kernel(img_ref, emg_ref,
                  w_img_ref, b_img_ref,
                  w_emg_ref, b_emg_ref,
                  w_out_img_ref, w_out_emg_ref,
                  b_out_ref,              # SMEM (1,) scalar bias
                  out_ref):
    # image encoder: Linear + ReLU -> (B, LATENT_IMG), f32 accumulation on MXU
    latent_img = jnp.dot(img_ref[...], w_img_ref[...],
                         preferred_element_type=jnp.float32) + b_img_ref[...]
    latent_img = jnp.maximum(latent_img, 0.0)

    # emg (signal) encoder: Linear + ReLU -> (B, LATENT_EMG)
    latent_emg = jnp.dot(emg_ref[...], w_emg_ref[...],
                         preferred_element_type=jnp.float32) + b_emg_ref[...]
    latent_emg = jnp.maximum(latent_emg, 0.0)

    # Head: torch.cat((latent_img, latent_emg), dim=1) @ W_out + b_out,
    # expressed without the concat and without an N=1 MXU matmul:
    # one VPU elementwise combine (f32 — v5e-safe) + a SINGLE XLU lane-reduce.
    head_elems = (latent_img * w_out_img_ref[...]
                  + latent_emg * w_out_emg_ref[...])
    out_ref[...] = jnp.sum(head_elems, axis=-1, keepdims=True) + b_out_ref[0]


# ----------------------- one-time param preparation -------------------------
def prepare_params(params):
    """Convert raw f32 params into the kernel-ready layout ONCE (hoisted out
    of the per-call path): bf16 encoder weights, f32 biases, head weight
    pre-split into two (1,128) rows, scalar head bias as a (1,) SMEM array."""
    w_img, b_img, w_emg, b_emg, w_out, b_out = params
    return (
        w_img.astype(jnp.bfloat16),                                   # (1024,128)
        b_img.reshape(1, LATENT_IMG).astype(jnp.float32),              # (1,128)
        w_emg.astype(jnp.bfloat16),                                    # (32,128)
        b_emg.reshape(1, LATENT_EMG).astype(jnp.float32),              # (1,128)
        w_out[:LATENT_IMG, 0].reshape(1, LATENT_IMG).astype(jnp.float32),
        w_out[LATENT_IMG:, 0].reshape(1, LATENT_EMG).astype(jnp.float32),
        b_out.reshape(-1).astype(jnp.float32),                         # (1,)
    )


# ------------------------------ wrapper -------------------------------------
@jax.jit
def mcefnn_forward(emg, image, kparams):
    """emg: (B, EMG_C, EMG_T), image: (B, IMG_C, IMG_H, IMG_W) -> (B, 1)."""
    (w_img_bf, b_img_f32, w_emg_bf, b_emg_f32,
     w_out_img_t, w_out_emg_t, b_out_s) = kparams
    b = image.shape[0]

    # nn.Flatten on NCHW / NCT; activations fed as bf16 (f32 MXU accumulation).
    img_flat = image.reshape(b, -1).astype(jnp.bfloat16)
    emg_flat = emg.reshape(b, -1).astype(jnp.bfloat16)

    def full_spec(shape):
        # single grid step, full-array block resident in VMEM
        # (full-extent blocks are exempt from the (8,128) divisibility rule)
        return pl.BlockSpec(shape, lambda: (0,) * len(shape))

    flops = (2 * b * (IMG_FEATS * LATENT_IMG + EMG_FEATS * LATENT_EMG)
             + 4 * b * (LATENT_IMG + LATENT_EMG))
    bytes_accessed = (
        2 * (img_flat.size + emg_flat.size + w_img_bf.size + w_emg_bf.size)
        + 4 * (b_img_f32.size + b_emg_f32.size + w_out_img_t.size
               + w_out_emg_t.size + b_out_s.size + b))

    out = pl.pallas_call(
        mcefnn_kernel,
        out_shape=jax.ShapeDtypeStruct((b, 1), jnp.float32),
        in_specs=[
            full_spec(img_flat.shape),
            full_spec(emg_flat.shape),
            full_spec(w_img_bf.shape),
            full_spec(b_img_f32.shape),
            full_spec(w_emg_bf.shape),
            full_spec(b_emg_f32.shape),
            full_spec(w_out_img_t.shape),
            full_spec(w_out_emg_t.shape),
            pl.BlockSpec(memory_space=pltpu.MemorySpace.SMEM),
        ],
        out_specs=full_spec((b, 1)),
        cost_estimate=pl.CostEstimate(flops=flops, transcendentals=0,
                                      bytes_accessed=bytes_accessed),
    )(img_flat, emg_flat, w_img_bf, b_img_f32, w_emg_bf, b_emg_f32,
      w_out_img_t, w_out_emg_t, b_out_s)

    return out


# --------------------- deterministic parameter init ------------------------
def init_params(key):
    ks = jax.random.split(key, 6)

    def linear_init(kw, kb, fan_in, fan_out):
        # mimic torch.nn.Linear default: U(-1/sqrt(fan_in), 1/sqrt(fan_in))
        bound = 1.0 / jnp.sqrt(jnp.float32(fan_in))
        w = jax.random.uniform(kw, (fan_in, fan_out), jnp.float32, -bound, bound)
        b = jax.random.uniform(kb, (1, fan_out), jnp.float32, -bound, bound)
        return w, b

    w_img, b_img = linear_init(ks[0], ks[1], IMG_FEATS, LATENT_IMG)
    w_emg, b_emg = linear_init(ks[2], ks[3], EMG_FEATS, LATENT_EMG)
    w_out, b_out = linear_init(ks[4], ks[5], LATENT_IMG + LATENT_EMG, 1)
    return (w_img, b_img, w_emg, b_emg, w_out, b_out)


# ------------------------ pure-JAX references --------------------------------
def mcefnn_reference_f32(emg, image, params):
    """Exact f32 semantics of the PyTorch module."""
    w_img, b_img, w_emg, b_emg, w_out, b_out = params
    b = image.shape[0]
    li = jnp.maximum(image.reshape(b, -1) @ w_img + b_img, 0.0)
    le = jnp.maximum(emg.reshape(b, -1) @ w_emg + b_emg, 0.0)
    combined = jnp.concatenate([li, le], axis=1)
    return combined @ w_out + b_out


def mcefnn_reference_bf16(emg, image, params):
    """Same math with the kernel's bf16 input/weight quantization (f32 acc)."""
    w_img, b_img, w_emg, b_emg, w_out, b_out = params
    b = image.shape[0]

    def q(x):
        return x.astype(jnp.bfloat16).astype(jnp.float32)

    li = jnp.maximum(q(image.reshape(b, -1)) @ q(w_img) + b_img, 0.0)
    le = jnp.maximum(q(emg.reshape(b, -1)) @ q(w_emg) + b_emg, 0.0)
    combined = jnp.concatenate([li, le], axis=1)
    return combined @ w_out + b_out


if __name__ == "__main__":
    key = jax.random.PRNGKey(0)
    k_emg, k_img, k_params = jax.random.split(key, 3)

    emg = jax.random.normal(k_emg, (B, EMG_C, EMG_T), dtype=jnp.float32)
    image = jax.random.normal(k_img, (B, IMG_C, IMG_H, IMG_W), dtype=jnp.float32)
    params = init_params(k_params)
    kparams = jax.tree_util.tree_map(jax.block_until_ready,
                                     prepare_params(params))  # hoisted, one-time

    out = mcefnn_forward(emg, image, kparams)
    out = jax.block_until_ready(out)
    assert out.shape == (B, 1), out.shape

    # Tight check against a reference with matching bf16 quantization
    # (validates the kernel logic itself).
    ref_bf16 = mcefnn_reference_bf16(emg, image, params)
    assert jnp.allclose(out, ref_bf16, atol=2e-3, rtol=2e-3), (out, ref_bf16)

    # Loose sanity check against the exact f32 PyTorch semantics
    # (bf16 input/weight rounding is the only difference).
    ref_f32 = mcefnn_reference_f32(emg, image, params)
    assert jnp.allclose(out, ref_f32, atol=5e-2, rtol=5e-2), (out, ref_f32)

    print("KERNEL_OK")
</pallas_src>

<mosaic_0001>
module attributes {stable_mosaic.version = 11 : i64} {
  func.func @mcefnn_kernel(%arg0: memref<2x1024xbf16, #tpu.memory_space<vmem>>, %arg1: memref<2x32xbf16, #tpu.memory_space<vmem>>, %arg2: memref<1024x128xbf16, #tpu.memory_space<vmem>>, %arg3: memref<1x128xf32, #tpu.memory_space<vmem>>, %arg4: memref<32x128xbf16, #tpu.memory_space<vmem>>, %arg5: memref<1x128xf32, #tpu.memory_space<vmem>>, %arg6: memref<1x128xf32, #tpu.memory_space<vmem>>, %arg7: memref<1x128xf32, #tpu.memory_space<vmem>>, %arg8: memref<1xf32, #tpu.memory_space<smem>>, %arg9: memref<2x1xf32, #tpu.memory_space<vmem>>) attributes {dimension_semantics = [], scalar_prefetch = 0 : i64, scratch_operands = 0 : i64, tpu.core_type = #tpu.core_type<tc>} {
    %c0 = arith.constant 0 : index
    %c0_0 = arith.constant 0 : index
    %0 = vector.load %arg0[%c0, %c0_0] : memref<2x1024xbf16, #tpu.memory_space<vmem>>, vector<2x1024xbf16>
    %c0_1 = arith.constant 0 : index
    %c0_2 = arith.constant 0 : index
    %1 = vector.load %arg2[%c0_1, %c0_2] : memref<1024x128xbf16, #tpu.memory_space<vmem>>, vector<1024x128xbf16>
    %cst = arith.constant dense<0.000000e+00> : vector<2x128xf32>
    %2 = tpu.matmul %0, %1, %cst {dimension_numbers = #tpu.dot_dimension_numbers<[1], [0], [0], [1], [0, 0, 1, 1], [], []>} : vector<2x1024xbf16>, vector<1024x128xbf16>, vector<2x128xf32> -> vector<2x128xf32>
    %c0_3 = arith.constant 0 : index
    %c0_4 = arith.constant 0 : index
    %3 = vector.load %arg3[%c0_3, %c0_4] : memref<1x128xf32, #tpu.memory_space<vmem>>, vector<1x128xf32>
    %4 = vector.broadcast %3 : vector<1x128xf32> to vector<2x128xf32>
    %5 = arith.addf %2, %4 : vector<2x128xf32>
    %cst_5 = arith.constant 0.000000e+00 : f32
    %6 = vector.broadcast %cst_5 : f32 to vector<2x128xf32>
    %7 = arith.maximumf %5, %6 : vector<2x128xf32>
    %c0_6 = arith.constant 0 : index
    %c0_7 = arith.constant 0 : index
    %8 = vector.load %arg1[%c0_6, %c0_7] : memref<2x32xbf16, #tpu.memory_space<vmem>>, vector<2x32xbf16>
    %c0_8 = arith.constant 0 : index
    %c0_9 = arith.constant 0 : index
    %9 = vector.load %arg4[%c0_8, %c0_9] : memref<32x128xbf16, #tpu.memory_space<vmem>>, vector<32x128xbf16>
    %cst_10 = arith.constant dense<0.000000e+00> : vector<2x128xf32>
    %10 = tpu.matmul %8, %9, %cst_10 {dimension_numbers = #tpu.dot_dimension_numbers<[1], [0], [0], [1], [0, 0, 1, 1], [], []>} : vector<2x32xbf16>, vector<32x128xbf16>, vector<2x128xf32> -> vector<2x128xf32>
    %c0_11 = arith.constant 0 : index
    %c0_12 = arith.constant 0 : index
    %11 = vector.load %arg5[%c0_11, %c0_12] : memref<1x128xf32, #tpu.memory_space<vmem>>, vector<1x128xf32>
    %12 = vector.broadcast %11 : vector<1x128xf32> to vector<2x128xf32>
    %13 = arith.addf %10, %12 : vector<2x128xf32>
    %cst_13 = arith.constant 0.000000e+00 : f32
    %14 = vector.broadcast %cst_13 : f32 to vector<2x128xf32>
    %15 = arith.maximumf %13, %14 : vector<2x128xf32>
    %c0_14 = arith.constant 0 : index
    %c0_15 = arith.constant 0 : index
    %16 = vector.load %arg6[%c0_14, %c0_15] : memref<1x128xf32, #tpu.memory_space<vmem>>, vector<1x128xf32>
    %17 = vector.broadcast %16 : vector<1x128xf32> to vector<2x128xf32>
    %18 = arith.mulf %7, %17 : vector<2x128xf32>
    %c0_16 = arith.constant 0 : index
    %c0_17 = arith.constant 0 : index
    %19 = vector.load %arg7[%c0_16, %c0_17] : memref<1x128xf32, #tpu.memory_space<vmem>>, vector<1x128xf32>
    %20 = vector.broadcast %19 : vector<1x128xf32> to vector<2x128xf32>
    %21 = arith.mulf %15, %20 : vector<2x128xf32>
    %22 = arith.addf %18, %21 : vector<2x128xf32>
    %cst_18 = arith.constant dense<0.000000e+00> : vector<2xf32>
    %23 = vector.multi_reduction <add>, %22, %cst_18 [1] : vector<2x128xf32> to vector<2xf32>
    %24 = vector.shape_cast %23 : vector<2xf32> to vector<2x1xf32>
    %c0_19 = arith.constant 0 : index
    %25 = memref.load %arg8[%c0_19] : memref<1xf32, #tpu.memory_space<smem>>
    %26 = vector.broadcast %25 : f32 to vector<2x1xf32>
    %27 = arith.addf %24, %26 : vector<2x1xf32>
    %c0_20 = arith.constant 0 : index
    %c0_21 = arith.constant 0 : index
    %28 = vector.load %arg9[%c0_20, %c0_21] : memref<2x1xf32, #tpu.memory_space<vmem>>, vector<2x1xf32>
    tpu.vector_store %arg9[%c0_20, %c0_21], %27 {strides = array<i32>} : memref<2x1xf32, #tpu.memory_space<vmem>>, vector<2x1xf32>,
    return
  }
}

</mosaic_0001>

<llo_original>
// kernel: mcefnn_forward.1
$region0: #{mcefnn_forward.1}
  #allocation0 [shape = 'u32[]', space=smem, size = 0x4, offset = 0x4, fixed_abs, tag = 'smem constant byte address 0x4 - core index']
  #allocation1 [shape = 'u32[144,128]{1,0:T(1,128)}', space=vmem, size = 0x12000, scoped, tag = 'internal scratch']
  #allocation2 [shape = 'f32[1]{0:T(128)S(6)}', space=smem, size = 0x200, scoped, tag = 'scoped memory for mcefnn_forward.1']
  %s0 = inlined_call_operand.vmem [shape: bf16[2,1024], index: 0, kind: input, shape index: {}]
  %s1 = inlined_call_operand.vmem [shape: bf16[2,32], index: 1, kind: input, shape index: {}]
  %s2 = inlined_call_operand.hbm [shape: bf16[1024,128], index: 2, kind: input, shape index: {}]
  %s3 = inlined_call_operand.vmem [shape: f32[1,128], index: 3, kind: input, shape index: {}]
  %s4 = inlined_call_operand.vmem [shape: bf16[32,128], index: 4, kind: input, shape index: {}]
  %s5 = inlined_call_operand.vmem [shape: f32[1,128], index: 5, kind: input, shape index: {}]
  %s6 = inlined_call_operand.vmem [shape: f32[1,128], index: 6, kind: input, shape index: {}]
  %s7 = inlined_call_operand.vmem [shape: f32[1,128], index: 7, kind: input, shape index: {}]
  %s8 = inlined_call_operand.<no memory space> [shape: f32[1], index: 8, kind: input, shape index: {}]
  %s9 = inlined_call_operand.vmem [shape: f32[2,1], index: 9, kind: output, shape index: {}]
  %s10 = sld [smem:[#allocation0]]
  $region50: #{mcefnn_forward.1} parent=0
    _
  %s12 = ssub.s32 1, %s10
  %s13 = scalar_select 0, %s12, %s10
  %14 = sst [smem:[#allocation2]] %s8
  $region1: #{mcefnn_forward.1} parent=0
    #allocation3 [shape = 'u8[262144]{0}', space=vmem, size = 0x40000, scoped, tag = 'input window, operand 2, single buffered']
    #allocation4 [shape = 's32[1]{0}', space=sflag, size = 0x4, scoped, tag = 'scoped memory for mcefnn_forward.1']
    %15 = vsyncpa [#allocation4], 0
    // Predicated region
    $region2: #{mcefnn_forward.1} parent=1 // pred_check
      _
    $region3: #{mcefnn_forward.1} parent=1 // pred_check_branch
      %17 = sbr.rel (0) target = $region5
    $region4: #{mcefnn_forward.1} parent=1 // pred_region
      _
    $region5: #{mcefnn_forward.1} parent=1 // pred_fallthru
      _
    // Predicated region
    $region6: #{mcefnn_forward.1} parent=1 // pred_check
      _
    $region7: #{mcefnn_forward.1} parent=1 // pred_check_branch
      %19 = sbr.rel (0) target = $region9
    $region8: #{mcefnn_forward.1} parent=1 // pred_region
      _
    $region9: #{mcefnn_forward.1} parent=1 // pred_fallthru
      _
    // Predicated region
    $region10: #{mcefnn_forward.1} parent=1 // pred_check
      _
    $region11: #{mcefnn_forward.1} parent=1 // pred_check_branch
      %21 = sbr.rel (0) target = $region13
    $region12: #{mcefnn_forward.1} parent=1 // pred_region
      %s23 = ssub.s32 8192, 8192
      %24 = vsyncadd [#allocation4], %s23
      %s25 = sshll.u32 [#allocation3], 4
      %s26 = int_to_ptr.vmem [resolvable:$true] %s25
      %31 = dma.hbm_to_vmem [thread:$0]  %s2, 8192, %s26, [#allocation4], 64, 64, 4
    $region13: #{mcefnn_forward.1} parent=1 // pred_fallthru
      _
    // Predicated region
    $region14: #{mcefnn_forward.1} parent=1 // pred_check
      _
    $region15: #{mcefnn_forward.1} parent=1 // pred_check_branch
      %33 = sbr.rel (0) target = $region17
    $region16: #{mcefnn_forward.1} parent=1 // pred_region
      _
    $region17: #{mcefnn_forward.1} parent=1 // pred_fallthru
      _
    // Predicated region
    $region18: #{mcefnn_forward.1} parent=1 // pred_check
      _
    $region19: #{mcefnn_forward.1} parent=1 // pred_check_branch
      %35 = sbr.rel (0) target = $region21
    $region20: #{mcefnn_forward.1} parent=1 // pred_region
      _
    $region21: #{mcefnn_forward.1} parent=1 // pred_fallthru
      _
    // Predicated region
    $region22: #{mcefnn_forward.1} parent=1 // pred_check
      _
    $region23: #{mcefnn_forward.1} parent=1 // pred_check_branch
      %37 = sbr.rel (0) target = $region25
    $region24: #{mcefnn_forward.1} parent=1 // pred_region
      _
    $region25: #{mcefnn_forward.1} parent=1 // pred_fallthru
      _
    // Predicated region
    $region26: #{mcefnn_forward.1} parent=1 // pred_check
      _
    $region27: #{mcefnn_forward.1} parent=1 // pred_check_branch
      %39 = sbr.rel (0) target = $region29
    $region28: #{mcefnn_forward.1} parent=1 // pred_region
      _
    $region29: #{mcefnn_forward.1} parent=1 // pred_fallthru
      _
    // Predicated region
    $region30: #{mcefnn_forward.1} parent=1 // pred_check
      _
    $region31: #{mcefnn_forward.1} parent=1 // pred_check_branch
      %41 = sbr.rel (0) target = $region33
    $region32: #{mcefnn_forward.1} parent=1 // pred_region
      _
    $region33: #{mcefnn_forward.1} parent=1 // pred_fallthru
      _
    // Predicated region
    $region34: #{mcefnn_forward.1} parent=1 // pred_check
      _
    $region35: #{mcefnn_forward.1} parent=1 // pred_check_branch
      %43 = sbr.rel (0) target = $region37
    $region36: #{mcefnn_forward.1} parent=1 // pred_region
      _
    $region37: #{mcefnn_forward.1} parent=1 // pred_fallthru
      _
    // Predicated region
    $region38: #{mcefnn_forward.1} parent=1 // pred_check
      _
    $region39: #{mcefnn_forward.1} parent=1 // pred_check_branch
      %45 = sbr.rel (0) target = $region41
    $region40: #{mcefnn_forward.1} parent=1 // pred_region
      %46 = dma.done [#allocation4], 8192
    $region41: #{mcefnn_forward.1} parent=1 // pred_fallthru
      _
    %v48 = vld [vmem:[%s0] sm:$0xff]
    %v49 = vld [vmem:[#allocation3] sm:$0xf]
    %v50 = vld [vmem:[#allocation3 + $0x4] sm:$0xf]
    %v51 = vld [vmem:[#allocation3 + $0x8] sm:$0xf]
    %v52 = vld [vmem:[#allocation3 + $0xc] sm:$0xf]
    %v53 = vld [vmem:[#allocation3 + $0x10] sm:$0xf]
    %v54 = vld [vmem:[#allocation3 + $0x14] sm:$0xf]
    %v55 = vld [vmem:[#allocation3 + $0x18] sm:$0xf]
    %v56 = vld [vmem:[#allocation3 + $0x1c] sm:$0xf]
    %v57 = vld [vmem:[#allocation3 + $0x20] sm:$0xf]
    %v58 = vld [vmem:[#allocation3 + $0x24] sm:$0xf]
    %v59 = vld [vmem:[#allocation3 + $0x28] sm:$0xf]
    %v60 = vld [vmem:[#allocation3 + $0x2c] sm:$0xf]
    %v61 = vld [vmem:[#allocation3 + $0x30] sm:$0xf]
    %v62 = vld [vmem:[#allocation3 + $0x34] sm:$0xf]
    %v63 = vld [vmem:[#allocation3 + $0x38] sm:$0xf]
    %v64 = vld [vmem:[#allocation3 + $0x3c] sm:$0xf]
    %v65 = vld [vmem:[#allocation3 + $0x40] sm:$0xf]
    %v66 = vld [vmem:[#allocation3 + $0x44] sm:$0xf]
    %v67 = vld [vmem:[#allocation3 + $0x48] sm:$0xf]
    %v68 = vld [vmem:[#allocation3 + $0x4c] sm:$0xf]
    %v69 = vld [vmem:[#allocation3 + $0x50] sm:$0xf]
    %v70 = vld [vmem:[#allocation3 + $0x54] sm:$0xf]
    %v71 = vld [vmem:[#allocation3 + $0x58] sm:$0xf]
    %v72 = vld [vmem:[#allocation3 + $0x5c] sm:$0xf]
    %v73 = vld [vmem:[#allocation3 + $0x60] sm:$0xf]
    %v74 = vld [vmem:[#allocation3 + $0x64] sm:$0xf]
    %v75 = vld [vmem:[#allocation3 + $0x68] sm:$0xf]
    %v76 = vld [vmem:[#allocation3 + $0x6c] sm:$0xf]
    %v77 = vld [vmem:[#allocation3 + $0x70] sm:$0xf]
    %v78 = vld [vmem:[#allocation3 + $0x74] sm:$0xf]
    %v79 = vld [vmem:[#allocation3 + $0x78] sm:$0xf]
    %v80 = vld [vmem:[#allocation3 + $0x7c] sm:$0xf]
    %v81 = vld [vmem:[#allocation3 + $0x80] sm:$0xf]
    %v82 = vld [vmem:[#allocation3 + $0x84] sm:$0xf]
    %v83 = vld [vmem:[#allocation3 + $0x88] sm:$0xf]
    %v84 = vld [vmem:[#allocation3 + $0x8c] sm:$0xf]
    %v85 = vld [vmem:[#allocation3 + $0x90] sm:$0xf]
    %v86 = vld [vmem:[#allocation3 + $0x94] sm:$0xf]
    %v87 = vld [vmem:[#allocation3 + $0x98] sm:$0xf]
    %v88 = vld [vmem:[#allocation3 + $0x9c] sm:$0xf]
    %v89 = vld [vmem:[#allocation3 + $0xa0] sm:$0xf]
    %v90 = vld [vmem:[#allocation3 + $0xa4] sm:$0xf]
    %v91 = vld [vmem:[#allocation3 + $0xa8] sm:$0xf]
    %v92 = vld [vmem:[#allocation3 + $0xac] sm:$0xf]
    %v93 = vld [vmem:[#allocation3 + $0xb0] sm:$0xf]
    %v94 = vld [vmem:[#allocation3 + $0xb4] sm:$0xf]
    %v95 = vld [vmem:[#allocation3 + $0xb8] sm:$0xf]
    %v96 = vld [vmem:[#allocation3 + $0xbc] sm:$0xf]
    %v97 = vld [vmem:[#allocation3 + $0xc0] sm:$0xf]
    %v98 = vld [vmem:[#allocation3 + $0xc4] sm:$0xf]
    %v99 = vld [vmem:[#allocation3 + $0xc8] sm:$0xf]
    %v100 = vld [vmem:[#allocation3 + $0xcc] sm:$0xf]
    %v101 = vld [vmem:[#allocation3 + $0xd0] sm:$0xf]
    %v102 = vld [vmem:[#allocation3 + $0xd4] sm:$0xf]
    %v103 = vld [vmem:[#allocation3 + $0xd8] sm:$0xf]
    %v104 = vld [vmem:[#allocation3 + $0xdc] sm:$0xf]
    %v105 = vld [vmem:[#allocation3 + $0xe0] sm:$0xf]
    %v106 = vld [vmem:[#allocation3 + $0xe4] sm:$0xf]
    %v107 = vld [vmem:[#allocation3 + $0xe8] sm:$0xf]
    %v108 = vld [vmem:[#allocation3 + $0xec] sm:$0xf]
    %v109 = vld [vmem:[#allocation3 + $0xf0] sm:$0xf]
    %v110 = vld [vmem:[#allocation3 + $0xf4] sm:$0xf]
    %v111 = vld [vmem:[#allocation3 + $0xf8] sm:$0xf]
    %v112 = vld [vmem:[#allocation3 + $0xfc] sm:$0xf]
    %v113 = vld [vmem:[#allocation3 + $0x100] sm:$0xf]
    %v114 = vld [vmem:[#allocation3 + $0x104] sm:$0xf]
    %v115 = vld [vmem:[#allocation3 + $0x108] sm:$0xf]
    %v116 = vld [vmem:[#allocation3 + $0x10c] sm:$0xf]
    %v117 = vld [vmem:[#allocation3 + $0x110] sm:$0xf]
    %v118 = vld [vmem:[#allocation3 + $0x114] sm:$0xf]
    %v119 = vld [vmem:[#allocation3 + $0x118] sm:$0xf]
    %v120 = vld [vmem:[#allocation3 + $0x11c] sm:$0xf]
    %v121 = vld [vmem:[#allocation3 + $0x120] sm:$0xf]
    %v122 = vld [vmem:[#allocation3 + $0x124] sm:$0xf]
    %v123 = vld [vmem:[#allocation3 + $0x128] sm:$0xf]
    %v124 = vld [vmem:[#allocation3 + $0x12c] sm:$0xf]
    %v125 = vld [vmem:[#allocation3 + $0x130] sm:$0xf]
    %v126 = vld [vmem:[#allocation3 + $0x134] sm:$0xf]
    %v127 = vld [vmem:[#allocation3 + $0x138] sm:$0xf]
    %v128 = vld [vmem:[#allocation3 + $0x13c] sm:$0xf]
    %v129 = vld [vmem:[#allocation3 + $0x140] sm:$0xf]
    %v130 = vld [vmem:[#allocation3 + $0x144] sm:$0xf]
    %v131 = vld [vmem:[#allocation3 + $0x148] sm:$0xf]
    %v132 = vld [vmem:[#allocation3 + $0x14c] sm:$0xf]
    %v133 = vld [vmem:[#allocation3 + $0x150] sm:$0xf]
    %v134 = vld [vmem:[#allocation3 + $0x154] sm:$0xf]
    %v135 = vld [vmem:[#allocation3 + $0x158] sm:$0xf]
    %v136 = vld [vmem:[#allocation3 + $0x15c] sm:$0xf]
    %v137 = vld [vmem:[#allocation3 + $0x160] sm:$0xf]
    %v138 = vld [vmem:[#allocation3 + $0x164] sm:$0xf]
    %v139 = vld [vmem:[#allocation3 + $0x168] sm:$0xf]
    %v140 = vld [vmem:[#allocation3 + $0x16c] sm:$0xf]
    %v141 = vld [vmem:[#allocation3 + $0x170] sm:$0xf]
    %v142 = vld [vmem:[#allocation3 + $0x174] sm:$0xf]
    %v143 = vld [vmem:[#allocation3 + $0x178] sm:$0xf]
    %v144 = vld [vmem:[#allocation3 + $0x17c] sm:$0xf]
    %v145 = vld [vmem:[#allocation3 + $0x180] sm:$0xf]
    %v146 = vld [vmem:[#allocation3 + $0x184] sm:$0xf]
    %v147 = vld [vmem:[#allocation3 + $0x188] sm:$0xf]
    %v148 = vld [vmem:[#allocation3 + $0x18c] sm:$0xf]
    %v149 = vld [vmem:[#allocation3 + $0x190] sm:$0xf]
    %v150 = vld [vmem:[#allocation3 + $0x194] sm:$0xf]
    %v151 = vld [vmem:[#allocation3 + $0x198] sm:$0xf]
    %v152 = vld [vmem:[#allocation3 + $0x19c] sm:$0xf]
    %v153 = vld [vmem:[#allocation3 + $0x1a0] sm:$0xf]
    %v154 = vld [vmem:[#allocation3 + $0x1a4] sm:$0xf]
    %v155 = vld [vmem:[#allocation3 + $0x1a8] sm:$0xf]
    %v156 = vld [vmem:[#allocation3 + $0x1ac] sm:$0xf]
    %v157 = vld [vmem:[#allocation3 + $0x1b0] sm:$0xf]
    %v158 = vld [vmem:[#allocation3 + $0x1b4] sm:$0xf]
    %v159 = vld [vmem:[#allocation3 + $0x1b8] sm:$0xf]
    %v160 = vld [vmem:[#allocation3 + $0x1bc] sm:$0xf]
    %v161 = vld [vmem:[#allocation3 + $0x1c0] sm:$0xf]
    %v162 = vld [vmem:[#allocation3 + $0x1c4] sm:$0xf]
    %v163 = vld [vmem:[#allocation3 + $0x1c8] sm:$0xf]
    %v164 = vld [vmem:[#allocation3 + $0x1cc] sm:$0xf]
    %v165 = vld [vmem:[#allocation3 + $0x1d0] sm:$0xf]
    %v166 = vld [vmem:[#allocation3 + $0x1d4] sm:$0xf]
    %v167 = vld [vmem:[#allocation3 + $0x1d8] sm:$0xf]
    %v168 = vld [vmem:[#allocation3 + $0x1dc] sm:$0xf]
    %v169 = vld [vmem:[#allocation3 + $0x1e0] sm:$0xf]
    %v170 = vld [vmem:[#allocation3 + $0x1e4] sm:$0xf]
    %v171 = vld [vmem:[#allocation3 + $0x1e8] sm:$0xf]
    %v172 = vld [vmem:[#allocation3 + $0x1ec] sm:$0xf]
    %v173 = vld [vmem:[#allocation3 + $0x1f0] sm:$0xf]
    %v174 = vld [vmem:[#allocation3 + $0x1f4] sm:$0xf]
    %v175 = vld [vmem:[#allocation3 + $0x1f8] sm:$0xf]
    %v176 = vld [vmem:[#allocation3 + $0x1fc] sm:$0xf]
    %v177 = vld [vmem:[%s3] sm:$0x1]
    %v179 = vlaneseq
    %v180 = vshrl.u32 %v179, 7
    %v181 = vsub.s32 0, %v180
    %v182 = vrot.slane %v177, %v181
    %v185 = vcombine.high %v48, %v48
    %v187 = vunpack.c.l.s4 1966171168
    %v188 = vunpack.c.0.s8 %v187
    %v189 = vlaneseq
    %v190 = vshrl.u32 %v189, 7
    %v191 = vsub.s32 %v188, %v190
    %v192 = vrot.slane %v48, %v191
    %v194 = vunpack.c.l.s4 1966171168
    %v195 = vunpack.c.0.s8 %v194
    %v196 = vlaneseq
    %v197 = vshrl.u32 %v196, 7
    %v198 = vsub.s32 %v195, %v197
    %v199 = vrot.slane %v185, %v198
    %v200 = vcombine.high %v192, %v192
    %v201 = vcombine.high %v199, %v199
    %v203 = vunpack.c.l.s4 1966171168
    %v204 = vunpack.c.0.s8 %v203
    %v205 = vlaneseq
    %v206 = vshrl.u32 %v205, 7
    %v207 = vsub.s32 %v204, %v206
    %v208 = vrot.slane %v192, %v207
    %v210 = vunpack.c.l.s4 1966171168
    %v211 = vunpack.c.0.s8 %v210
    %v212 = vlaneseq
    %v213 = vshrl.u32 %v212, 7
    %v214 = vsub.s32 %v211, %v213
    %v215 = vrot.slane %v199, %v214
    %v217 = vunpack.c.l.s4 1966171168
    %v218 = vunpack.c.0.s8 %v217
    %v219 = vlaneseq
    %v220 = vshrl.u32 %v219, 7
    %v221 = vsub.s32 %v218, %v220
    %v222 = vrot.slane %v200, %v221
    %v224 = vunpack.c.l.s4 1966171168
    %v225 = vunpack.c.0.s8 %v224
    %v226 = vlaneseq
    %v227 = vshrl.u32 %v226, 7
    %v228 = vsub.s32 %v225, %v227
    %v229 = vrot.slane %v201, %v228
    %v230 = vcombine.high %v208, %v208
    %v231 = vcombine.high %v215, %v215
    %v232 = vcombine.high %v222, %v222
    %v233 = vcombine.high %v229, %v229
    %v370 = vunpack.c.l.b16 %v49
    %v371 = vunpack.c.l.b16 %v50
    %v372 = vunpack.c.l.b16 %v51
    %v373 = vunpack.c.l.b16 %v52
    %v374 = vunpack.c.l.b16 %v53
    %v375 = vunpack.c.l.b16 %v54
    %v376 = vunpack.c.l.b16 %v55
    %v377 = vunpack.c.l.b16 %v56
    %v378 = vunpack.c.l.b16 %v57
    %v379 = vunpack.c.l.b16 %v58
    %v380 = vunpack.c.l.b16 %v59
    %v381 = vunpack.c.l.b16 %v60
    %v382 = vunpack.c.l.b16 %v61
    %v383 = vunpack.c.l.b16 %v62
    %v384 = vunpack.c.l.b16 %v63
    %v385 = vunpack.c.l.b16 %v64
    %v386 = vunpack.c.l.b16 %v65
    %v387 = vunpack.c.l.b16 %v66
    %v388 = vunpack.c.l.b16 %v67
    %v389 = vunpack.c.l.b16 %v68
    %v390 = vunpack.c.l.b16 %v69
    %v391 = vunpack.c.l.b16 %v70
    %v392 = vunpack.c.l.b16 %v71
    %v393 = vunpack.c.l.b16 %v72
    %v394 = vunpack.c.l.b16 %v73
    %v395 = vunpack.c.l.b16 %v74
    %v396 = vunpack.c.l.b16 %v75
    %v397 = vunpack.c.l.b16 %v76
    %v398 = vunpack.c.l.b16 %v77
    %v399 = vunpack.c.l.b16 %v78
    %v400 = vunpack.c.l.b16 %v79
    %v401 = vunpack.c.l.b16 %v80
    %v402 = vunpack.c.l.b16 %v81
    %v403 = vunpack.c.l.b16 %v82
    %v404 = vunpack.c.l.b16 %v83
    %v405 = vunpack.c.l.b16 %v84
    %v406 = vunpack.c.l.b16 %v85
    %v407 = vunpack.c.l.b16 %v86
    %v408 = vunpack.c.l.b16 %v87
    %v409 = vunpack.c.l.b16 %v88
    %v410 = vunpack.c.l.b16 %v89
    %v411 = vunpack.c.l.b16 %v90
    %v412 = vunpack.c.l.b16 %v91
    %v413 = vunpack.c.l.b16 %v92
    %v414 = vunpack.c.l.b16 %v93
    %v415 = vunpack.c.l.b16 %v94
    %v416 = vunpack.c.l.b16 %v95
    %v417 = vunpack.c.l.b16 %v96
    %v418 = vunpack.c.l.b16 %v97
    %v419 = vunpack.c.l.b16 %v98
    %v420 = vunpack.c.l.b16 %v99
    %v421 = vunpack.c.l.b16 %v100
    %v422 = vunpack.c.l.b16 %v101
    %v423 = vunpack.c.l.b16 %v102
    %v424 = vunpack.c.l.b16 %v103
    %v425 = vunpack.c.l.b16 %v104
    %v426 = vunpack.c.l.b16 %v105
    %v427 = vunpack.c.l.b16 %v106
    %v428 = vunpack.c.l.b16 %v107
    %v429 = vunpack.c.l.b16 %v108
    %v430 = vunpack.c.l.b16 %v109
    %v431 = vunpack.c.l.b16 %v110
    %v432 = vunpack.c.l.b16 %v111
    %v433 = vunpack.c.l.b16 %v112
    %v434 = vunpack.c.l.b16 %v113
    %v435 = vunpack.c.l.b16 %v114
    %v436 = vunpack.c.l.b16 %v115
    %v437 = vunpack.c.l.b16 %v116
    %v438 = vunpack.c.l.b16 %v117
    %v439 = vunpack.c.l.b16 %v118
    %v440 = vunpack.c.l.b16 %v119
    %v441 = vunpack.c.l.b16 %v120
    %v442 = vunpack.c.l.b16 %v121
    %v443 = vunpack.c.l.b16 %v122
    %v444 = vunpack.c.l.b16 %v123
    %v445 = vunpack.c.l.b16 %v124
    %v446 = vunpack.c.l.b16 %v125
    %v447 = vunpack.c.l.b16 %v126
    %v448 = vunpack.c.l.b16 %v127
    %v449 = vunpack.c.l.b16 %v128
    %v450 = vunpack.c.l.b16 %v129
    %v451 = vunpack.c.l.b16 %v130
    %v452 = vunpack.c.l.b16 %v131
    %v453 = vunpack.c.l.b16 %v132
    %v454 = vunpack.c.l.b16 %v133
    %v455 = vunpack.c.l.b16 %v134
    %v456 = vunpack.c.l.b16 %v135
    %v457 = vunpack.c.l.b16 %v136
    %v458 = vunpack.c.l.b16 %v137
    %v459 = vunpack.c.l.b16 %v138
    %v460 = vunpack.c.l.b16 %v139
    %v461 = vunpack.c.l.b16 %v140
    %v462 = vunpack.c.l.b16 %v141
    %v463 = vunpack.c.l.b16 %v142
    %v464 = vunpack.c.l.b16 %v143
    %v465 = vunpack.c.l.b16 %v144
    %v466 = vunpack.c.l.b16 %v145
    %v467 = vunpack.c.l.b16 %v146
    %v468 = vunpack.c.l.b16 %v147
    %v469 = vunpack.c.l.b16 %v148
    %v470 = vunpack.c.l.b16 %v149
    %v471 = vunpack.c.l.b16 %v150
    %v472 = vunpack.c.l.b16 %v151
    %v473 = vunpack.c.l.b16 %v152
    %v474 = vunpack.c.l.b16 %v153
    %v475 = vunpack.c.l.b16 %v154
    %v476 = vunpack.c.l.b16 %v155
    %v477 = vunpack.c.l.b16 %v156
    %v478 = vunpack.c.l.b16 %v157
    %v479 = vunpack.c.l.b16 %v158
    %v480 = vunpack.c.l.b16 %v159
    %v481 = vunpack.c.l.b16 %v160
    %v482 = vunpack.c.l.b16 %v161
    %v483 = vunpack.c.l.b16 %v162
    %v484 = vunpack.c.l.b16 %v163
    %v485 = vunpack.c.l.b16 %v164
    %v486 = vunpack.c.l.b16 %v165
    %v487 = vunpack.c.l.b16 %v166
    %v488 = vunpack.c.l.b16 %v167
    %v489 = vunpack.c.l.b16 %v168
    %v490 = vunpack.c.l.b16 %v169
    %v491 = vunpack.c.l.b16 %v170
    %v492 = vunpack.c.l.b16 %v171
    %v493 = vunpack.c.l.b16 %v172
    %v494 = vunpack.c.l.b16 %v173
    %v495 = vunpack.c.l.b16 %v174
    %v496 = vunpack.c.l.b16 %v175
    %v497 = vunpack.c.l.b16 %v176
    %v498 = vpack.c.b16 %v371, %v370
    %v499 = vpack.c.b16 %v373, %v372
    %v500 = vpack.c.b16 %v375, %v374
    %v501 = vpack.c.b16 %v377, %v376
    %v502 = vpack.c.b16 %v379, %v378
    %v503 = vpack.c.b16 %v381, %v380
    %v504 = vpack.c.b16 %v383, %v382
    %v505 = vpack.c.b16 %v385, %v384
    %v506 = vpack.c.b16 %v387, %v386
    %v507 = vpack.c.b16 %v389, %v388
    %v508 = vpack.c.b16 %v391, %v390
    %v509 = vpack.c.b16 %v393, %v392
    %v510 = vpack.c.b16 %v395, %v394
    %v511 = vpack.c.b16 %v397, %v396
    %v512 = vpack.c.b16 %v399, %v398
    %v513 = vpack.c.b16 %v401, %v400
    %v514 = vpack.c.b16 %v403, %v402
    %v515 = vpack.c.b16 %v405, %v404
    %v516 = vpack.c.b16 %v407, %v406
    %v517 = vpack.c.b16 %v409, %v408
    %v518 = vpack.c.b16 %v411, %v410
    %v519 = vpack.c.b16 %v413, %v412
    %v520 = vpack.c.b16 %v415, %v414
    %v521 = vpack.c.b16 %v417, %v416
    %v522 = vpack.c.b16 %v419, %v418
    %v523 = vpack.c.b16 %v421, %v420
    %v524 = vpack.c.b16 %v423, %v422
    %v525 = vpack.c.b16 %v425, %v424
    %v526 = vpack.c.b16 %v427, %v426
    %v527 = vpack.c.b16 %v429, %v428
    %v528 = vpack.c.b16 %v431, %v430
    %v529 = vpack.c.b16 %v433, %v432
    %v530 = vpack.c.b16 %v435, %v434
    %v531 = vpack.c.b16 %v437, %v436
    %v532 = vpack.c.b16 %v439, %v438
    %v533 = vpack.c.b16 %v441, %v440
    %v534 = vpack.c.b16 %v443, %v442
    %v535 = vpack.c.b16 %v445, %v444
    %v536 = vpack.c.b16 %v447, %v446
    %v537 = vpack.c.b16 %v449, %v448
    %v538 = vpack.c.b16 %v451, %v450
    %v539 = vpack.c.b16 %v453, %v452
    %v540 = vpack.c.b16 %v455, %v454
    %v541 = vpack.c.b16 %v457, %v456
    %v542 = vpack.c.b16 %v459, %v458
    %v543 = vpack.c.b16 %v461, %v460
    %v544 = vpack.c.b16 %v463, %v462
    %v545 = vpack.c.b16 %v465, %v464
    %v546 = vpack.c.b16 %v467, %v466
    %v547 = vpack.c.b16 %v469, %v468
    %v548 = vpack.c.b16 %v471, %v470
    %v549 = vpack.c.b16 %v473, %v472
    %v550 = vpack.c.b16 %v475, %v474
    %v551 = vpack.c.b16 %v477, %v476
    %v552 = vpack.c.b16 %v479, %v478
    %v553 = vpack.c.b16 %v481, %v480
    %v554 = vpack.c.b16 %v483, %v482
    %v555 = vpack.c.b16 %v485, %v484
    %v556 = vpack.c.b16 %v487, %v486
    %v557 = vpack.c.b16 %v489, %v488
    %v558 = vpack.c.b16 %v491, %v490
    %v559 = vpack.c.b16 %v493, %v492
    %v560 = vpack.c.b16 %v495, %v494
    %v561 = vpack.c.b16 %v497, %v496
    %626 = vmatprep.subr.bf16.mxu0 0
    %627 = vmatpush1.bf16.msra.mxu0 %v498
    %628 = vmatprep.subr.bf16.mxu0 0
    %629 = vmatpush1.bf16.msra.mxu0 %v499
    %630 = vmatprep.subr.bf16.mxu0 0
    %631 = vmatpush1.bf16.msra.mxu0 %v500
    %632 = vmatprep.subr.bf16.mxu0 0
    %633 = vmatpush1.bf16.msra.mxu0 %v501
    %634 = vmatprep.subr.bf16.mxu0 0
    %635 = vmatpush1.bf16.msra.mxu0 %v502
    %636 = vmatprep.subr.bf16.mxu0 0
    %637 = vmatpush1.bf16.msra.mxu0 %v503
    %638 = vmatprep.subr.bf16.mxu0 0
    %639 = vmatpush1.bf16.msra.mxu0 %v504
    %640 = vmatprep.subr.bf16.mxu0 0
    %641 = vmatpush1.bf16.msra.mxu0 %v505
    %642 = vmatprep.subr.bf16.mxu0 0
    %643 = vmatpush1.bf16.msra.mxu0 %v506
    %644 = vmatprep.subr.bf16.mxu0 0
    %645 = vmatpush1.bf16.msra.mxu0 %v507
    %646 = vmatprep.subr.bf16.mxu0 0
    %647 = vmatpush1.bf16.msra.mxu0 %v508
    %648 = vmatprep.subr.bf16.mxu0 0
    %649 = vmatpush1.bf16.msra.mxu0 %v509
    %650 = vmatprep.subr.bf16.mxu0 0
    %651 = vmatpush1.bf16.msra.mxu0 %v510
    %652 = vmatprep.subr.bf16.mxu0 0
    %653 = vmatpush1.bf16.msra.mxu0 %v511
    %654 = vmatprep.subr.bf16.mxu0 0
    %655 = vmatpush1.bf16.msra.mxu0 %v512
    %656 = vmatprep.subr.bf16.mxu0 0
    %657 = vmatpush1.bf16.msra.mxu0 %v513
    %658 = vmatprep.mubr.bf16.mxu0 %v222
    %659 = vmatmul.mubr.bf16.gmra.mrb[0].mxu0 %v208
    %v660 = vpop.f32.mrb[0].mxu0
    %v661 = vadd.f32 %v182, %v660
    %v662 = vpop.f32.mrb[0].mxu0
    %v663 = vpop.f32.mrb[0].mxu0
    %v664 = vpop.f32.mrb[0].mxu0
    %665 = vdwg.mxu0
    %666 = vmatprep.subr.bf16.mxu0 0
    %667 = vmatpush1.bf16.msra.mxu0 %v514
    %668 = vmatprep.subr.bf16.mxu0 0
    %669 = vmatpush1.bf16.msra.mxu0 %v515
    %670 = vmatprep.subr.bf16.mxu0 0
    %671 = vmatpush1.bf16.msra.mxu0 %v516
    %672 = vmatprep.subr.bf16.mxu0 0
    %673 = vmatpush1.bf16.msra.mxu0 %v517
    %674 = vmatprep.subr.bf16.mxu0 0
    %675 = vmatpush1.bf16.msra.mxu0 %v518
    %676 = vmatprep.subr.bf16.mxu0 0
    %677 = vmatpush1.bf16.msra.mxu0 %v519
    %678 = vmatprep.subr.bf16.mxu0 0
    %679 = vmatpush1.bf16.msra.mxu0 %v520
    %680 = vmatprep.subr.bf16.mxu0 0
    %681 = vmatpush1.bf16.msra.mxu0 %v521
    %682 = vmatprep.subr.bf16.mxu0 0
    %683 = vmatpush1.bf16.msra.mxu0 %v522
    %684 = vmatprep.subr.bf16.mxu0 0
    %685 = vmatpush1.bf16.msra.mxu0 %v523
    %686 = vmatprep.subr.bf16.mxu0 0
    %687 = vmatpush1.bf16.msra.mxu0 %v524
    %688 = vmatprep.subr.bf16.mxu0 0
    %689 = vmatpush1.bf16.msra.mxu0 %v525
    %690 = vmatprep.subr.bf16.mxu0 0
    %691 = vmatpush1.bf16.msra.mxu0 %v526
    %692 = vmatprep.subr.bf16.mxu0 0
    %693 = vmatpush1.bf16.msra.mxu0 %v527
    %694 = vmatprep.subr.bf16.mxu0 0
    %695 = vmatpush1.bf16.msra.mxu0 %v528
    %696 = vmatprep.subr.bf16.mxu0 0
    %697 = vmatpush1.bf16.msra.mxu0 %v529
    %698 = vmatprep.mubr.bf16.mxu0 %v232
    %699 = vmatmul.mubr.bf16.gmra.mrb[0].mxu0 %v230
    %v700 = vpop.f32.mrb[0].mxu0
    %v701 = vadd.f32 %v661, %v700
    %v702 = vpop.f32.mrb[0].mxu0
    %v703 = vpop.f32.mrb[0].mxu0
    %v704 = vpop.f32.mrb[0].mxu0
    %705 = vdwg.mxu0
    %706 = vmatprep.subr.bf16.mxu0 0
    %707 = vmatpush1.bf16.msra.mxu0 %v530
    %708 = vmatprep.subr.bf16.mxu0 0
    %709 = vmatpush1.bf16.msra.mxu0 %v531
    %710 = vmatprep.subr.bf16.mxu0 0
    %711 = vmatpush1.bf16.msra.mxu0 %v532
    %712 = vmatprep.subr.bf16.mxu0 0
    %713 = vmatpush1.bf16.msra.mxu0 %v533
    %714 = vmatprep.subr.bf16.mxu0 0
    %715 = vmatpush1.bf16.msra.mxu0 %v534
    %716 = vmatprep.subr.bf16.mxu0 0
    %717 = vmatpush1.bf16.msra.mxu0 %v535
    %718 = vmatprep.subr.bf16.mxu0 0
    %719 = vmatpush1.bf16.msra.mxu0 %v536
    %720 = vmatprep.subr.bf16.mxu0 0
    %721 = vmatpush1.bf16.msra.mxu0 %v537
    %722 = vmatprep.subr.bf16.mxu0 0
    %723 = vmatpush1.bf16.msra.mxu0 %v538
    %724 = vmatprep.subr.bf16.mxu0 0
    %725 = vmatpush1.bf16.msra.mxu0 %v539
    %726 = vmatprep.subr.bf16.mxu0 0
    %727 = vmatpush1.bf16.msra.mxu0 %v540
    %728 = vmatprep.subr.bf16.mxu0 0
    %729 = vmatpush1.bf16.msra.mxu0 %v541
    %730 = vmatprep.subr.bf16.mxu0 0
    %731 = vmatpush1.bf16.msra.mxu0 %v542
    %732 = vmatprep.subr.bf16.mxu0 0
    %733 = vmatpush1.bf16.msra.mxu0 %v543
    %734 = vmatprep.subr.bf16.mxu0 0
    %735 = vmatpush1.bf16.msra.mxu0 %v544
    %736 = vmatprep.subr.bf16.mxu0 0
    %737 = vmatpush1.bf16.msra.mxu0 %v545
    %738 = vmatprep.mubr.bf16.mxu0 %v229
    %739 = vmatmul.mubr.bf16.gmra.mrb[0].mxu0 %v215
    %v740 = vpop.f32.mrb[0].mxu0
    %v741 = vadd.f32 %v701, %v740
    %v742 = vpop.f32.mrb[0].mxu0
    %v743 = vpop.f32.mrb[0].mxu0
    %v744 = vpop.f32.mrb[0].mxu0
    %745 = vdwg.mxu0
    %746 = vmatprep.subr.bf16.mxu0 0
    %747 = vmatpush1.bf16.msra.mxu0 %v546
    %748 = vmatprep.subr.bf16.mxu0 0
    %749 = vmatpush1.bf16.msra.mxu0 %v547
    %750 = vmatprep.subr.bf16.mxu0 0
    %751 = vmatpush1.bf16.msra.mxu0 %v548
    %752 = vmatprep.subr.bf16.mxu0 0
    %753 = vmatpush1.bf16.msra.mxu0 %v549
    %754 = vmatprep.subr.bf16.mxu0 0
    %755 = vmatpush1.bf16.msra.mxu0 %v550
    %756 = vmatprep.subr.bf16.mxu0 0
    %757 = vmatpush1.bf16.msra.mxu0 %v551
    %758 = vmatprep.subr.bf16.mxu0 0
    %759 = vmatpush1.bf16.msra.mxu0 %v552
    %760 = vmatprep.subr.bf16.mxu0 0
    %761 = vmatpush1.bf16.msra.mxu0 %v553
    %762 = vmatprep.subr.bf16.mxu0 0
    %763 = vmatpush1.bf16.msra.mxu0 %v554
    %764 = vmatprep.subr.bf16.mxu0 0
    %765 = vmatpush1.bf16.msra.mxu0 %v555
    %766 = vmatprep.subr.bf16.mxu0 0
    %767 = vmatpush1.bf16.msra.mxu0 %v556
    %768 = vmatprep.subr.bf16.mxu0 0
    %769 = vmatpush1.bf16.msra.mxu0 %v557
    %770 = vmatprep.subr.bf16.mxu0 0
    %771 = vmatpush1.bf16.msra.mxu0 %v558
    %772 = vmatprep.subr.bf16.mxu0 0
    %773 = vmatpush1.bf16.msra.mxu0 %v559
    %774 = vmatprep.subr.bf16.mxu0 0
    %775 = vmatpush1.bf16.msra.mxu0 %v560
    %776 = vmatprep.subr.bf16.mxu0 0
    %777 = vmatpush1.bf16.msra.mxu0 %v561
    %778 = vmatprep.mubr.bf16.mxu0 %v233
    %779 = vmatmul.mubr.bf16.gmra.mrb[0].mxu0 %v231
    %v780 = vpop.f32.mrb[0].mxu0
    %v781 = vadd.f32 %v741, %v780
    %v782 = vpop.f32.mrb[0].mxu0
    %v783 = vpop.f32.mrb[0].mxu0
    %v784 = vpop.f32.mrb[0].mxu0
    %785 = vdwg.mxu0
    %v786 = vmax.f32 %v781, 0.0
    %v787 = vld [vmem:[%s1] sm:$0x1]
    %v788 = vld [vmem:[%s4] sm:$0xf]
    %v789 = vld [vmem:[%s4 + $0x4] sm:$0xf]
    %v790 = vld [vmem:[%s4 + $0x8] sm:$0xf]
    %v791 = vld [vmem:[%s4 + $0xc] sm:$0xf]
    %v792 = vld [vmem:[%s5] sm:$0x1]
    %v794 = vlaneseq
    %v795 = vshrl.u32 %v794, 7
    %v796 = vsub.s32 0, %v795
    %v797 = vrot.slane %v792, %v796
    %v803 = vunpack.c.l.b16 %v788
    %v804 = vunpack.c.l.b16 %v789
    %v805 = vunpack.c.l.b16 %v790
    %v806 = vunpack.c.l.b16 %v791
    %v807 = vpack.c.b16 %v804, %v803
    %v808 = vpack.c.b16 %v806, %v805
    %vm811 = vcmask 261120
    %v813 = vsel %vm811, %v787, 0
    %815 = vmatprep.subr.bf16.mxu0 0
    %816 = vmatpush1.bf16.msra.mxu0 %v807
    %817 = vmatprep.subr.bf16.mxu0 0
    %818 = vmatpush1.bf16.msra.mxu0 %v808
    %819 = vmatprep.subr.bf16.mxu0 0
    %820 = vmatpush1.bf16.msra.mxu0 0
    %821 = vmatprep.subr.bf16.mxu0 0
    %822 = vmatpush1.bf16.msra.mxu0 0
    %823 = vmatprep.subr.bf16.mxu0 0
    %824 = vmatpush1.bf16.msra.mxu0 0
    %825 = vmatprep.subr.bf16.mxu0 0
    %826 = vmatpush1.bf16.msra.mxu0 0
    %827 = vmatprep.subr.bf16.mxu0 0
    %828 = vmatpush1.bf16.msra.mxu0 0
    %829 = vmatprep.subr.bf16.mxu0 0
    %830 = vmatpush1.bf16.msra.mxu0 0
    %831 = vmatprep.subr.bf16.mxu0 0
    %832 = vmatpush1.bf16.msra.mxu0 0
    %833 = vmatprep.subr.bf16.mxu0 0
    %834 = vmatpush1.bf16.msra.mxu0 0
    %835 = vmatprep.subr.bf16.mxu0 0
    %836 = vmatpush1.bf16.msra.mxu0 0
    %837 = vmatprep.subr.bf16.mxu0 0
    %838 = vmatpush1.bf16.msra.mxu0 0
    %839 = vmatprep.subr.bf16.mxu0 0
    %840 = vmatpush1.bf16.msra.mxu0 0
    %841 = vmatprep.subr.bf16.mxu0 0
    %842 = vmatpush1.bf16.msra.mxu0 0
    %843 = vmatprep.subr.bf16.mxu0 0
    %844 = vmatpush1.bf16.msra.mxu0 0
    %845 = vmatprep.subr.bf16.mxu0 0
    %846 = vmatpush1.bf16.msra.mxu0 0
    %847 = vmatprep.mubr.bf16.mxu0 0
    %848 = vmatmul.mubr.bf16.gmra.mrb[0].mxu0 %v813
    %v849 = vpop.f32.mrb[0].mxu0
    %v850 = vadd.f32 %v797, %v849
    %v851 = vpop.f32.mrb[0].mxu0
    %v852 = vpop.f32.mrb[0].mxu0
    %v853 = vpop.f32.mrb[0].mxu0
    %854 = vdwg.mxu0
    %v855 = vmax.f32 %v850, 0.0
    %v856 = vld [vmem:[%s6] sm:$0x1]
    %v858 = vlaneseq
    %v859 = vshrl.u32 %v858, 7
    %v860 = vsub.s32 0, %v859
    %v861 = vrot.slane %v856, %v860
    %v863 = vmul.f32 %v786, %v861
    %v864 = vld [vmem:[%s7] sm:$0x1]
    %v866 = vlaneseq
    %v867 = vshrl.u32 %v866, 7
    %v868 = vsub.s32 0, %v867
    %v869 = vrot.slane %v864, %v868
    %v871 = vmul.f32 %v855, %v869
    %v872 = vadd.f32 %v863, %v871
    %vm873 = vcmask 1041408
    %v874 = vsel %vm873, %v872, 0.0
    %875 = vadd.xlane.f32.xlu0 %v874
    %v876 = vpop.xlane.xlu0 %875
    %s877 = sld [smem:[#allocation2]]
    %v878 = vstv %s877
    %v879 = vadd.f32 %v876, %v878
    %vm880 = vcmask 1024
    %881 = vst.msk [vmem:[%s9] sm:$0x3] %vm880, %v879
    // Predicated region
    $region42: #{mcefnn_forward.1} parent=1 // pred_check
      _
    $region43: #{mcefnn_forward.1} parent=1 // pred_check_branch
      %883 = sbr.rel (0) target = $region45
    $region44: #{mcefnn_forward.1} parent=1 // pred_region
      _
    $region45: #{mcefnn_forward.1} parent=1 // pred_fallthru
      _
    // Predicated region
    $region46: #{mcefnn_forward.1} parent=1 // pred_check
      _
    $region47: #{mcefnn_forward.1} parent=1 // pred_check_branch
      %885 = sbr.rel (0) target = $region49
    $region48: #{mcefnn_forward.1} parent=1 // pred_region
      _
    $region49: #{mcefnn_forward.1} parent=1 // pred_fallthru
      _
    %886 = vsyncpa [#allocation4], 1

</llo_original>
